<compile_context>
chip_gen: v7x
topology: tpu7x:2x2x1
jax: 0.10.0
libtpu: 0.0.40
codegen_flags: <defaults>
</compile_context>

<pallas_src>
import jax
import jax.numpy as jnp
from jax import lax
from jax.experimental import pallas as pl
from jax.experimental.pallas import tpu as pltpu


_SMOOTH = 1e-08


def _round_up(x: int, m: int) -> int:
    return ((x + m - 1) // m) * m


def _sublane_multiple(*dtypes) -> int:
    # Mosaic second-minor tiling requirement: 8 for 4-byte, 16 for 2-byte, 32 for 1-byte.
    item = min(jnp.dtype(d).itemsize for d in dtypes)
    return max(8, 32 // min(item, 4))


def _choose_row_block(R: int, sub: int, cap: int = 256) -> int:
    """Largest divisor of R that is a multiple of `sub` and <= cap; else full R (always legal)."""
    b = (cap // sub) * sub
    while b >= sub:
        if R % b == 0:
            return b
        b -= sub
    # No legal split -> use the full row extent (block dim == full array dim is legal).
    return R


def _choose_tile_hw(hw: int, row_block: int, bytes_per_col: int,
                    target_lanes: int = 32768,
                    pair_budget_bytes: int = 12 * 1024 * 1024) -> int:
    """Lane-dense HW tile (multiple of 128).

    `pair_budget_bytes` bounds row_block * tile * (itemsize_o + itemsize_l), i.e. one
    pipeline buffer of BOTH inputs; double-buffering makes the steady-state input
    footprint ~2x that (~24 MiB), which fits v7x's 64 MiB VMEM with headroom.
    """
    hw128 = _round_up(hw, 128)
    by_budget = (pair_budget_bytes // (row_block * bytes_per_col)) // 128 * 128
    return max(128, min(target_lanes, hw128, by_budget))


def _make_dice_kernel(*, tile_hw: int, row_block: int, hw: int,
                      n_hw_total: int, n_hw_per_split: int, has_dup: bool):
    assert tile_hw % 128 == 0
    n_chunks = tile_hw // 128
    rem_last = hw - (n_hw_total - 1) * tile_hw      # valid columns in the last HW block
    ragged = rem_last < tile_hw
    tail_full = rem_last // 128                     # full 128-lane chunks in the last block
    tail_part = rem_last % 128                      # lanes of the final partial chunk

    def kernel(o_ref, l_ref, num_ref, den_ref):
        # num_ref/den_ref: (row_block, 128) int32 accumulators. Their BlockSpec index is
        # constant along the HW axis, so they stay VMEM-resident across it: zeroed at the
        # first HW step, written back to HBM once per (row, split) block.
        p = pl.program_id(1)          # HW split across TensorCores (extent 1 or 2)
        h = pl.program_id(2)          # HW reduction step within the split

        @pl.when(h == 0)
        def _init():
            num_ref[...] = jnp.zeros_like(num_ref)
            den_ref[...] = jnp.zeros_like(den_ref)

        def accumulate(lo, lane_mask=None):
            # Emulate torch `x.round().byte()` in int32: round-to-nearest-even + low byte.
            o_i = jnp.round(o_ref[:, pl.ds(lo, 128)].astype(jnp.float32)).astype(jnp.int32)
            l_i = jnp.round(l_ref[:, pl.ds(lo, 128)].astype(jnp.float32)).astype(jnp.int32)
            num_t = (o_i & l_i) & 255                 # uint8(o) & uint8(l)
            den_t = (o_i + l_i) & 255                 # uint8 add wraps mod 256
            if lane_mask is not None:
                num_t = jnp.where(lane_mask, num_t, 0)
                den_t = jnp.where(lane_mask, den_t, 0)
            num_ref[...] += num_t
            den_ref[...] += den_t

        def full_chunks(n):
            def body(i, carry):
                accumulate(pl.multiple_of(i * 128, 128))
                return carry
            lax.fori_loop(0, n, body, 0, unroll=min(8, n))

        def tail_chunks():
            # Last (ragged) HW block: shorter chunk loop + static lane mask for the final
            # partial chunk. Lanes >= rem_last may hold garbage (block past array end)
            # and are always masked out.
            if tail_full > 0:
                full_chunks(tail_full)
            if tail_part > 0:
                lane = lax.broadcasted_iota(jnp.int32, (row_block, 128), 1)
                accumulate(tail_full * 128, lane_mask=lane < tail_part)

        if n_hw_total == 1:
            # Single HW block; no dynamic block-index logic needed.
            if ragged:
                tail_chunks()
            else:
                full_chunks(n_chunks)
        else:
            g = p * n_hw_per_split + h                # global HW-block index
            if ragged:
                # g >= n_hw_total (clamped duplicate when the split is uneven) does nothing.
                pl.when(g < n_hw_total - 1)(lambda: full_chunks(n_chunks))
                pl.when(g == n_hw_total - 1)(tail_chunks)
            elif has_dup:
                pl.when(g < n_hw_total)(lambda: full_chunks(n_chunks))
            else:
                full_chunks(n_chunks)

    return kernel


def dice_coef(outputs: jax.Array, labels: jax.Array, *,
              max_tile_lanes: int = 32768) -> jax.Array:
    """Pallas equivalent of DiceCoef.forward. Inputs NCHW (float/int dtype); returns (C,) f32."""
    assert outputs.shape == labels.shape and outputs.ndim == 4
    N, C, H, W = outputs.shape
    HW = H * W
    R = N * C

    # Lane-dense 2D view; keep native dtypes (HBM bytes are the whole cost of this kernel).
    o2 = outputs.reshape(R, HW)
    l2 = labels.reshape(R, HW)

    sub = _sublane_multiple(o2.dtype, l2.dtype)
    row_block = _choose_row_block(R, sub)
    n_row_blocks = R // row_block if R % row_block == 0 else 1

    bytes_per_col = o2.dtype.itemsize + l2.dtype.itemsize
    tile_hw = _choose_tile_hw(HW, row_block, bytes_per_col, target_lanes=max_tile_lanes)
    n_hw_total = (HW + tile_hw - 1) // tile_hw

    # If the row axis gives no parallelism, split the HW axis across v7x's two
    # TensorCores instead (extra "parallel" grid axis; harmless on single-TC v5e/v6e).
    hw_split = 2 if (n_row_blocks == 1 and n_hw_total >= 2) else 1
    n_hw_per_split = (n_hw_total + hw_split - 1) // hw_split
    has_dup = hw_split * n_hw_per_split > n_hw_total

    if has_dup:
        # Clamp the (single) over-the-end block index back in range; the kernel skips it.
        def in_idx(r, p, h):
            return (r, jnp.minimum(p * n_hw_per_split + h, n_hw_total - 1))
    else:
        def in_idx(r, p, h):
            return (r, p * n_hw_per_split + h)

    def out_idx(r, p, h):
        return (p, r, 0)

    kernel = _make_dice_kernel(tile_hw=tile_hw, row_block=row_block, hw=HW,
                               n_hw_total=n_hw_total, n_hw_per_split=n_hw_per_split,
                               has_dup=has_dup)

    cost = pl.CostEstimate(
        flops=10 * R * HW,
        transcendentals=0,
        bytes_accessed=R * HW * bytes_per_col + 2 * hw_split * R * 128 * 4,
    )

    num_lanes, den_lanes = pl.pallas_call(
        kernel,
        out_shape=(
            jax.ShapeDtypeStruct((hw_split, R, 128), jnp.int32),
            jax.ShapeDtypeStruct((hw_split, R, 128), jnp.int32),
        ),
        grid=(n_row_blocks, hw_split, n_hw_per_split),
        in_specs=[
            pl.BlockSpec((row_block, tile_hw), in_idx),
            pl.BlockSpec((row_block, tile_hw), in_idx),
        ],
        out_specs=(
            pl.BlockSpec((None, row_block, 128), out_idx),
            pl.BlockSpec((None, row_block, 128), out_idx),
        ),
        compiler_params=pltpu.CompilerParams(
            dimension_semantics=("parallel", "parallel", "arbitrary"),
            vmem_limit_bytes=48 * 1024 * 1024,
        ),
        cost_estimate=cost,
    )(o2, l2)

    # Tiny epilogue in plain JAX: cast once, single cross-lane reduce, batch mean, divide.
    num_rows = jnp.sum(num_lanes.astype(jnp.float32), axis=(0, 2)).reshape(N, C)
    den_rows = jnp.sum(den_lanes.astype(jnp.float32), axis=(0, 2)).reshape(N, C)
    numerator = 2.0 * jnp.mean(num_rows, axis=0)
    denominator = jnp.mean(den_rows, axis=0)
    return (numerator + _SMOOTH) / (denominator + _SMOOTH)


def _reference(outputs, labels):
    """Pure-JAX reference matching the PyTorch DiceCoef semantics."""
    o = jnp.round(outputs.astype(jnp.float32)).astype(jnp.int32) & 255
    l = jnp.round(labels.astype(jnp.float32)).astype(jnp.int32) & 255
    num = 2.0 * jnp.mean(jnp.sum((o & l).astype(jnp.float32), axis=(2, 3)), axis=0)
    den = jnp.mean(jnp.sum(((o + l) & 255).astype(jnp.float32), axis=(2, 3)), axis=0)
    return (num + _SMOOTH) / (den + _SMOOTH)


if __name__ == "__main__":
    key = jax.random.PRNGKey(0)
    k1, k2 = jax.random.split(key)
    N, C, H, W = 2, 4, 16, 16

    # Probability-like outputs and binary labels (typical segmentation metric inputs).
    outputs = jax.random.uniform(k1, (N, C, H, W), dtype=jnp.float32)
    labels = (jax.random.uniform(k2, (N, C, H, W), dtype=jnp.float32) > 0.5).astype(jnp.float32)

    dice = jax.block_until_ready(dice_coef(outputs, labels))
    ref = _reference(outputs, labels)
    assert dice.shape == (C,)
    assert jnp.allclose(dice, ref, atol=1e-6, rtol=1e-6), (dice, ref)

    # Native-dtype path (bf16 inputs, cast to f32 inside the kernel): halves HBM bytes.
    o_bf16 = outputs.astype(jnp.bfloat16)
    l_bf16 = labels.astype(jnp.bfloat16)
    dice_bf16 = jax.block_until_ready(dice_coef(o_bf16, l_bf16))
    ref_bf16 = _reference(o_bf16, l_bf16)
    assert jnp.allclose(dice_bf16, ref_bf16, atol=1e-6, rtol=1e-6), (dice_bf16, ref_bf16)

    # Exercise the multi-step HW reduction + 2-way TensorCore split path with a small
    # forced tile (32x32 spatial, tile 256 -> grid (1, 2, 2), accumulators across steps).
    k3, k4 = jax.random.split(k2)
    outputs2 = jax.random.uniform(k3, (N, C, 32, 32), dtype=jnp.float32)
    labels2 = (jax.random.uniform(k4, (N, C, 32, 32), dtype=jnp.float32) > 0.5).astype(jnp.float32)
    dice2 = jax.block_until_ready(dice_coef(outputs2, labels2, max_tile_lanes=256))
    ref2 = _reference(outputs2, labels2)
    assert jnp.allclose(dice2, ref2, atol=1e-6, rtol=1e-6), (dice2, ref2)

    print("KERNEL_OK")
</pallas_src>

<mosaic_0001>
module attributes {stable_mosaic.version = 11 : i64} {
  func.func @kernel(%arg0: i32, %arg1: i32, %arg2: i32, %arg3: memref<8x256xf32, #tpu.memory_space<vmem>>, %arg4: memref<8x256xf32, #tpu.memory_space<vmem>>, %arg5: memref<1x8x128xi32, #tpu.memory_space<vmem>>, %arg6: memref<1x8x128xi32, #tpu.memory_space<vmem>>) attributes {dimension_semantics = [#tpu.dimension_semantics<parallel>, #tpu.dimension_semantics<parallel>, #tpu.dimension_semantics<arbitrary>], iteration_bounds = array<i64: 1, 1, 1>, scalar_prefetch = 0 : i64, scratch_operands = 0 : i64, tpu.core_type = #tpu.core_type<tc>, window_params = [{transform_indices = @transform_0, window_bounds = array<i64: 8, 256>}, {transform_indices = @transform_1, window_bounds = array<i64: 8, 256>}, {transform_indices = @transform_2, window_bounds = array<i64: 1, 8, 128>}, {transform_indices = @transform_3, window_bounds = array<i64: 1, 8, 128>}]} {
    %c0_i32 = arith.constant 0 : i32
    %0 = arith.cmpi eq, %arg2, %c0_i32 : i32
    %1 = arith.extui %0 : i1 to i32
    %c0_i32_0 = arith.constant 0 : i32
    %2 = arith.cmpi ne, %1, %c0_i32_0 : i32
    scf.if %2 {
      %c0_i32_33 = arith.constant 0 : i32
      %59 = vector.broadcast %c0_i32_33 : i32 to vector<8x128xi32>
      %c0_34 = arith.constant 0 : index
      %c0_35 = arith.constant 0 : index
      %c0_36 = arith.constant 0 : index
      %60 = vector.load %arg5[%c0_34, %c0_35, %c0_36] : memref<1x8x128xi32, #tpu.memory_space<vmem>>, vector<1x8x128xi32>
      %61 = vector.shape_cast %60 : vector<1x8x128xi32> to vector<8x128xi32>
      %62 = vector.shape_cast %59 : vector<8x128xi32> to vector<1x8x128xi32>
      tpu.vector_store %arg5[%c0_34, %c0_35, %c0_36], %62 {strides = array<i32>} : memref<1x8x128xi32, #tpu.memory_space<vmem>>, vector<1x8x128xi32>,
      %c0_i32_37 = arith.constant 0 : i32
      %63 = vector.broadcast %c0_i32_37 : i32 to vector<8x128xi32>
      %c0_38 = arith.constant 0 : index
      %c0_39 = arith.constant 0 : index
      %c0_40 = arith.constant 0 : index
      %64 = vector.load %arg6[%c0_38, %c0_39, %c0_40] : memref<1x8x128xi32, #tpu.memory_space<vmem>>, vector<1x8x128xi32>
      %65 = vector.shape_cast %64 : vector<1x8x128xi32> to vector<8x128xi32>
      %66 = vector.shape_cast %63 : vector<8x128xi32> to vector<1x8x128xi32>
      tpu.vector_store %arg6[%c0_38, %c0_39, %c0_40], %66 {strides = array<i32>} : memref<1x8x128xi32, #tpu.memory_space<vmem>>, vector<1x8x128xi32>,
    } else {
    }
    %c0_i32_1 = arith.constant 0 : i32
    %c128_i32 = arith.constant 128 : i32
    %3 = arith.muli %c0_i32_1, %c128_i32 : i32
    %4 = tpu.assume_multiple %3, 128 : i32
    %c0 = arith.constant 0 : index
    %5 = arith.index_cast %4 : i32 to index
    %6 = vector.load %arg3[%c0, %5] : memref<8x256xf32, #tpu.memory_space<vmem>>, vector<8x128xf32>
    %7 = math.roundeven %6 : vector<8x128xf32>
    %8 = arith.fptosi %7 : vector<8x128xf32> to vector<8x128xi32>
    %c0_2 = arith.constant 0 : index
    %9 = arith.index_cast %4 : i32 to index
    %10 = vector.load %arg4[%c0_2, %9] : memref<8x256xf32, #tpu.memory_space<vmem>>, vector<8x128xf32>
    %11 = math.roundeven %10 : vector<8x128xf32>
    %12 = arith.fptosi %11 : vector<8x128xf32> to vector<8x128xi32>
    %13 = arith.andi %8, %12 : vector<8x128xi32>
    %c255_i32 = arith.constant 255 : i32
    %14 = vector.broadcast %c255_i32 : i32 to vector<8x128xi32>
    %15 = arith.andi %13, %14 : vector<8x128xi32>
    %16 = arith.addi %8, %12 : vector<8x128xi32>
    %c255_i32_3 = arith.constant 255 : i32
    %17 = vector.broadcast %c255_i32_3 : i32 to vector<8x128xi32>
    %18 = arith.andi %16, %17 : vector<8x128xi32>
    %c0_4 = arith.constant 0 : index
    %c0_5 = arith.constant 0 : index
    %c0_6 = arith.constant 0 : index
    %19 = vector.load %arg5[%c0_4, %c0_5, %c0_6] : memref<1x8x128xi32, #tpu.memory_space<vmem>>, vector<1x8x128xi32>
    %20 = vector.shape_cast %19 : vector<1x8x128xi32> to vector<8x128xi32>
    %21 = arith.addi %20, %15 : vector<8x128xi32>
    %c0_7 = arith.constant 0 : index
    %c0_8 = arith.constant 0 : index
    %c0_9 = arith.constant 0 : index
    %22 = vector.load %arg5[%c0_7, %c0_8, %c0_9] : memref<1x8x128xi32, #tpu.memory_space<vmem>>, vector<1x8x128xi32>
    %23 = vector.shape_cast %22 : vector<1x8x128xi32> to vector<8x128xi32>
    %24 = vector.shape_cast %21 : vector<8x128xi32> to vector<1x8x128xi32>
    tpu.vector_store %arg5[%c0_7, %c0_8, %c0_9], %24 {strides = array<i32>} : memref<1x8x128xi32, #tpu.memory_space<vmem>>, vector<1x8x128xi32>,
    %c0_10 = arith.constant 0 : index
    %c0_11 = arith.constant 0 : index
    %c0_12 = arith.constant 0 : index
    %25 = vector.load %arg6[%c0_10, %c0_11, %c0_12] : memref<1x8x128xi32, #tpu.memory_space<vmem>>, vector<1x8x128xi32>
    %26 = vector.shape_cast %25 : vector<1x8x128xi32> to vector<8x128xi32>
    %27 = arith.addi %26, %18 : vector<8x128xi32>
    %c0_13 = arith.constant 0 : index
    %c0_14 = arith.constant 0 : index
    %c0_15 = arith.constant 0 : index
    %28 = vector.load %arg6[%c0_13, %c0_14, %c0_15] : memref<1x8x128xi32, #tpu.memory_space<vmem>>, vector<1x8x128xi32>
    %29 = vector.shape_cast %28 : vector<1x8x128xi32> to vector<8x128xi32>
    %30 = vector.shape_cast %27 : vector<8x128xi32> to vector<1x8x128xi32>
    tpu.vector_store %arg6[%c0_13, %c0_14, %c0_15], %30 {strides = array<i32>} : memref<1x8x128xi32, #tpu.memory_space<vmem>>, vector<1x8x128xi32>,
    %c1_i32 = arith.constant 1 : i32
    %c128_i32_16 = arith.constant 128 : i32
    %31 = arith.muli %c1_i32, %c128_i32_16 : i32
    %32 = tpu.assume_multiple %31, 128 : i32
    %c0_17 = arith.constant 0 : index
    %33 = arith.index_cast %32 : i32 to index
    %34 = vector.load %arg3[%c0_17, %33] : memref<8x256xf32, #tpu.memory_space<vmem>>, vector<8x128xf32>
    %35 = math.roundeven %34 : vector<8x128xf32>
    %36 = arith.fptosi %35 : vector<8x128xf32> to vector<8x128xi32>
    %c0_18 = arith.constant 0 : index
    %37 = arith.index_cast %32 : i32 to index
    %38 = vector.load %arg4[%c0_18, %37] : memref<8x256xf32, #tpu.memory_space<vmem>>, vector<8x128xf32>
    %39 = math.roundeven %38 : vector<8x128xf32>
    %40 = arith.fptosi %39 : vector<8x128xf32> to vector<8x128xi32>
    %41 = arith.andi %36, %40 : vector<8x128xi32>
    %c255_i32_19 = arith.constant 255 : i32
    %42 = vector.broadcast %c255_i32_19 : i32 to vector<8x128xi32>
    %43 = arith.andi %41, %42 : vector<8x128xi32>
    %44 = arith.addi %36, %40 : vector<8x128xi32>
    %c255_i32_20 = arith.constant 255 : i32
    %45 = vector.broadcast %c255_i32_20 : i32 to vector<8x128xi32>
    %46 = arith.andi %44, %45 : vector<8x128xi32>
    %c0_21 = arith.constant 0 : index
    %c0_22 = arith.constant 0 : index
    %c0_23 = arith.constant 0 : index
    %47 = vector.load %arg5[%c0_21, %c0_22, %c0_23] : memref<1x8x128xi32, #tpu.memory_space<vmem>>, vector<1x8x128xi32>
    %48 = vector.shape_cast %47 : vector<1x8x128xi32> to vector<8x128xi32>
    %49 = arith.addi %48, %43 : vector<8x128xi32>
    %c0_24 = arith.constant 0 : index
    %c0_25 = arith.constant 0 : index
    %c0_26 = arith.constant 0 : index
    %50 = vector.load %arg5[%c0_24, %c0_25, %c0_26] : memref<1x8x128xi32, #tpu.memory_space<vmem>>, vector<1x8x128xi32>
    %51 = vector.shape_cast %50 : vector<1x8x128xi32> to vector<8x128xi32>
    %52 = vector.shape_cast %49 : vector<8x128xi32> to vector<1x8x128xi32>
    tpu.vector_store %arg5[%c0_24, %c0_25, %c0_26], %52 {strides = array<i32>} : memref<1x8x128xi32, #tpu.memory_space<vmem>>, vector<1x8x128xi32>,
    %c0_27 = arith.constant 0 : index
    %c0_28 = arith.constant 0 : index
    %c0_29 = arith.constant 0 : index
    %53 = vector.load %arg6[%c0_27, %c0_28, %c0_29] : memref<1x8x128xi32, #tpu.memory_space<vmem>>, vector<1x8x128xi32>
    %54 = vector.shape_cast %53 : vector<1x8x128xi32> to vector<8x128xi32>
    %55 = arith.addi %54, %46 : vector<8x128xi32>
    %c0_30 = arith.constant 0 : index
    %c0_31 = arith.constant 0 : index
    %c0_32 = arith.constant 0 : index
    %56 = vector.load %arg6[%c0_30, %c0_31, %c0_32] : memref<1x8x128xi32, #tpu.memory_space<vmem>>, vector<1x8x128xi32>
    %57 = vector.shape_cast %56 : vector<1x8x128xi32> to vector<8x128xi32>
    %58 = vector.shape_cast %55 : vector<8x128xi32> to vector<1x8x128xi32>
    tpu.vector_store %arg6[%c0_30, %c0_31, %c0_32], %58 {strides = array<i32>} : memref<1x8x128xi32, #tpu.memory_space<vmem>>, vector<1x8x128xi32>,
    %c2_i32 = arith.constant 2 : i32
    return
  }
  func.func @transform_0(%arg0: i32, %arg1: i32, %arg2: i32) -> (i32, i32) {
    %c1_i32 = arith.constant 1 : i32
    %0 = arith.muli %arg1, %c1_i32 : i32
    %1 = arith.addi %0, %arg2 : i32
    %c0_i32 = arith.constant 0 : i32
    return %arg0, %1 : i32, i32
  }
  func.func @transform_1(%arg0: i32, %arg1: i32, %arg2: i32) -> (i32, i32) {
    %c1_i32 = arith.constant 1 : i32
    %0 = arith.muli %arg1, %c1_i32 : i32
    %1 = arith.addi %0, %arg2 : i32
    %c0_i32 = arith.constant 0 : i32
    return %arg0, %1 : i32, i32
  }
  func.func @transform_2(%arg0: i32, %arg1: i32, %arg2: i32) -> (i32, i32, i32) {
    %c0_i32 = arith.constant 0 : i32
    %c0_i32_0 = arith.constant 0 : i32
    return %arg1, %arg0, %c0_i32 : i32, i32, i32
  }
  func.func @transform_3(%arg0: i32, %arg1: i32, %arg2: i32) -> (i32, i32, i32) {
    %c0_i32 = arith.constant 0 : i32
    %c0_i32_0 = arith.constant 0 : i32
    return %arg1, %arg0, %c0_i32 : i32, i32, i32
  }
}

</mosaic_0001>

<llo_original>
// kernel: tpu_custom_call.1
$region0: #{tpu_custom_call.1}
  #allocation0 [shape = 'u32[]', space=smem, size = 0x4, offset = 0x4, fixed_abs, tag = 'smem constant byte address 0x4 - core index']
  #allocation1 [shape = 'u32[144,128]{1,0:T(1,128)}', space=vmem, size = 0x12000, scoped, tag = 'internal scratch']
  %s0 = inlined_call_operand.hbm [shape: f32[8,256], index: 0, kind: input, shape index: {}]
  %s1 = inlined_call_operand.hbm [shape: f32[8,256], index: 1, kind: input, shape index: {}]
  %s2 = inlined_call_operand.hbm [shape: s32[1,8,128], index: 2, kind: output, shape index: {0}]
  %s3 = inlined_call_operand.hbm [shape: s32[1,8,128], index: 3, kind: output, shape index: {1}]
  %4 = xla_tuple %s2, %s3
  %s5 = sld [smem:[#allocation0]]
  $region38: #{tpu_custom_call.1} parent=0
    _
  %s7 = ssub.s32 1, %s5
  %s8 = scalar_select 0, %s7, %s5
  $region1: #{tpu_custom_call.1} parent=0
    #allocation2 [shape = 'u8[8192]{0}', space=vmem, size = 0x2000, scoped, tag = 'input window, operand 0, single buffered']
    #allocation3 [shape = 's32[1]{0}', space=sflag, size = 0x4, scoped, tag = 'scoped memory for tpu_custom_call.1']
    #allocation4 [shape = 's32[1]{0}', space=sflag, size = 0x4, scoped, tag = 'scoped memory for tpu_custom_call.1']
    #allocation5 [shape = 'u8[8192]{0}', space=vmem, size = 0x2000, scoped, tag = 'input window, operand 1, single buffered']
    #allocation6 [shape = 's32[1]{0}', space=sflag, size = 0x4, scoped, tag = 'scoped memory for tpu_custom_call.1']
    #allocation7 [shape = 'u8[4096]{0}', space=vmem, size = 0x1000, scoped, tag = 'output window, operand 0, single buffered']
    #allocation8 [shape = 'u8[4096]{0}', space=vmem, size = 0x1000, scoped, tag = 'output window, operand 1, single buffered']
    #allocation9 [shape = 's32[1]{0}', space=sflag, size = 0x4, scoped, tag = 'scoped memory for tpu_custom_call.1']
    %9 = vsyncpa [#allocation3], 0
    %10 = vsyncpa [#allocation6], 0
    %11 = vsyncpa [#allocation4], 0
    %12 = vsyncpa [#allocation9], 0
    // Predicated region
    $region2: #{tpu_custom_call.1} parent=1 // pred_check
      _
    $region3: #{tpu_custom_call.1} parent=1 // pred_check_branch
      %14 = sbr.rel (0) target = $region5
    $region4: #{tpu_custom_call.1} parent=1 // pred_region
      %s15 = sadd.s32 0, 0
      %s16 = smul.u32 2, %s15
      %s18 = ssub.s32 256, 256
      %19 = vsyncadd [#allocation3], %s18
      %s20 = smul.addr %s16, 128
      %s21 = scalar_lea.hbm %s0, %s20
      %s23 = sshll.u32 [#allocation2], 4
      %s24 = int_to_ptr.vmem [resolvable:$true] %s23
      %26 = dma.hbm_to_vmem [thread:$0]  %s21, 256, %s24, [#allocation3]
    $region5: #{tpu_custom_call.1} parent=1 // pred_fallthru
      _
    // Predicated region
    $region6: #{tpu_custom_call.1} parent=1 // pred_check
      _
    $region7: #{tpu_custom_call.1} parent=1 // pred_check_branch
      %28 = sbr.rel (0) target = $region9
    $region8: #{tpu_custom_call.1} parent=1 // pred_region
      %s29 = sadd.s32 0, 0
      %s30 = smul.u32 2, %s29
      %s32 = ssub.s32 256, 256
      %33 = vsyncadd [#allocation6], %s32
      %s34 = smul.addr %s30, 128
      %s35 = scalar_lea.hbm %s1, %s34
      %s37 = sshll.u32 [#allocation5], 4
      %s38 = int_to_ptr.vmem [resolvable:$true] %s37
      %40 = dma.hbm_to_vmem [thread:$0]  %s35, 256, %s38, [#allocation6]
    $region9: #{tpu_custom_call.1} parent=1 // pred_fallthru
      _
    // Predicated region
    $region10: #{tpu_custom_call.1} parent=1 // pred_check
      _
    $region11: #{tpu_custom_call.1} parent=1 // pred_check_branch
      %42 = sbr.rel (0) target = $region13
    $region12: #{tpu_custom_call.1} parent=1 // pred_region
      %43 = dma.done [#allocation3], 256
    $region13: #{tpu_custom_call.1} parent=1 // pred_fallthru
      _
    // Predicated region
    $region14: #{tpu_custom_call.1} parent=1 // pred_check
      _
    $region15: #{tpu_custom_call.1} parent=1 // pred_check_branch
      %45 = sbr.rel (0) target = $region17
    $region16: #{tpu_custom_call.1} parent=1 // pred_region
      %46 = dma.done [#allocation6], 256
    $region17: #{tpu_custom_call.1} parent=1 // pred_fallthru
      _
    %s47 = sadd.s32 0, 0
    %s48 = smul.u32 2, %s47
    %s49 = sadd.s32 0, 0
    %s50 = smul.u32 2, %s49
    %p51 = scmp.eq.s32.totalorder 0, 0
    // Predicated region
    $region18: #{tpu_custom_call.1} parent=1 // pred_check
      %p52 = pneg %p51
    $region19: #{tpu_custom_call.1} parent=1 // pred_check_branch
      %54 = sbr.rel (%p52) target = $region21
    $region20: #{tpu_custom_call.1} parent=1 // pred_region
      %55 = vst [vmem:[#allocation7] sm:$0xff] 0
      %56 = vst [vmem:[#allocation8] sm:$0xff] 0
    $region21: #{tpu_custom_call.1} parent=1 // pred_fallthru
      _
    %v57 = vld [vmem:[#allocation2] sm:$0xff]
    %v58 = vcvt.f32.s32.ties.to.even %v57
    %v59 = vld [vmem:[#allocation5] sm:$0xff]
    %v60 = vcvt.f32.s32.ties.to.even %v59
    %v61 = vand.u32 %v58, %v60
    %v62 = vand.u32 %v61, 255
    %v63 = vadd.s32 %v58, %v60
    %v64 = vand.u32 %v63, 255
    %v65 = vld [vmem:[#allocation7] sm:$0xff]
    %v66 = vadd.s32 %v65, %v62
    %67 = vst [vmem:[#allocation7] sm:$0xff] %v66
    %v68 = vld [vmem:[#allocation8] sm:$0xff]
    %v69 = vadd.s32 %v68, %v64
    %70 = vst [vmem:[#allocation8] sm:$0xff] %v69
    %s71 = scalar_lea.vmem [#allocation2], 8
    %v72 = vld [vmem:[%s71] sm:$0xff]
    %v73 = vcvt.f32.s32.ties.to.even %v72
    %s74 = scalar_lea.vmem [#allocation5], 8
    %v75 = vld [vmem:[%s74] sm:$0xff]
    %v76 = vcvt.f32.s32.ties.to.even %v75
    %v77 = vand.u32 %v73, %v76
    %v78 = vand.u32 %v77, 255
    %v79 = vadd.s32 %v73, %v76
    %v80 = vand.u32 %v79, 255
    %v81 = vld [vmem:[#allocation7] sm:$0xff]
    %v82 = vadd.s32 %v81, %v78
    %83 = vst [vmem:[#allocation7] sm:$0xff] %v82
    %v84 = vld [vmem:[#allocation8] sm:$0xff]
    %v85 = vadd.s32 %v84, %v80
    %86 = vst [vmem:[#allocation8] sm:$0xff] %v85
    // Predicated region
    $region22: #{tpu_custom_call.1} parent=1 // pred_check
      _
    $region23: #{tpu_custom_call.1} parent=1 // pred_check_branch
      %88 = sbr.rel (0) target = $region25
    $region24: #{tpu_custom_call.1} parent=1 // pred_region
      %s90 = ssub.s32 128, 128
      %91 = vsyncadd [#allocation4], %s90
      %s93 = sshll.u32 [#allocation7], 4
      %s94 = int_to_ptr.vmem [resolvable:$true] %s93
      %96 = dma.vmem_to_hbm [thread:$0]  %s94, 128, %s2, [#allocation4]
    $region25: #{tpu_custom_call.1} parent=1 // pred_fallthru
      _
    // Predicated region
    $region26: #{tpu_custom_call.1} parent=1 // pred_check
      _
    $region27: #{tpu_custom_call.1} parent=1 // pred_check_branch
      %98 = sbr.rel (0) target = $region29
    $region28: #{tpu_custom_call.1} parent=1 // pred_region
      %s100 = ssub.s32 128, 128
      %101 = vsyncadd [#allocation9], %s100
      %s103 = sshll.u32 [#allocation8], 4
      %s104 = int_to_ptr.vmem [resolvable:$true] %s103
      %106 = dma.vmem_to_hbm [thread:$0]  %s104, 128, %s3, [#allocation9]
    $region29: #{tpu_custom_call.1} parent=1 // pred_fallthru
      _
    // Predicated region
    $region30: #{tpu_custom_call.1} parent=1 // pred_check
      _
    $region31: #{tpu_custom_call.1} parent=1 // pred_check_branch
      %108 = sbr.rel (0) target = $region33
    $region32: #{tpu_custom_call.1} parent=1 // pred_region
      %109 = dma.done [#allocation4], 128
    $region33: #{tpu_custom_call.1} parent=1 // pred_fallthru
      _
    // Predicated region
    $region34: #{tpu_custom_call.1} parent=1 // pred_check
      _
    $region35: #{tpu_custom_call.1} parent=1 // pred_check_branch
      %111 = sbr.rel (0) target = $region37
    $region36: #{tpu_custom_call.1} parent=1 // pred_region
      %112 = dma.done [#allocation9], 128
    $region37: #{tpu_custom_call.1} parent=1 // pred_fallthru
      _
    %113 = vsyncpa [#allocation3], 1
    %114 = vsyncpa [#allocation6], 1
    %115 = vsyncpa [#allocation4], 1
    %116 = vsyncpa [#allocation9], 1

</llo_original>
